<compile_context>
chip_gen: v5e
topology: v5e:2x2
jax: 0.10.0
libtpu: 0.0.40
codegen_flags: <defaults>
</compile_context>

<pallas_src>
import functools

import jax
import jax.numpy as jnp
from jax.experimental import pallas as pl
from jax.experimental.pallas import tpu as pltpu  # noqa: F401  (TPU backend)


def _mlp_fused_kernel(*refs, relu_flags):
    """Fused forward: x -> (matmul + bias + optional ReLU) chained over layers.

    refs = (x_ref, w0_ref, b0_ref, w1_ref, b1_ref, ..., o_ref)
    All refs are full-array VMEM-resident blocks; intermediate activations
    stay on-chip (vregs / VMEM) and never touch HBM.
    """
    x_ref = refs[0]
    o_ref = refs[-1]
    wb_refs = refs[1:-1]

    h = x_ref[...].astype(jnp.float32)
    for i, relu in enumerate(relu_flags):
        w = wb_refs[2 * i][...]
        b = wb_refs[2 * i + 1][...]          # [1, out] -> broadcasts over batch
        h = jnp.dot(h, w, preferred_element_type=jnp.float32) + b
        if relu:
            h = jnp.maximum(h, 0.0)
    o_ref[...] = h.astype(o_ref.dtype)


def mlp_forward_fused(x, weights, biases2d, relu_flags):
    """Run the whole MLP in one pallas_call (everything VMEM-resident)."""
    batch, in_f = x.shape
    assert in_f == weights[0].shape[0]
    out_f = weights[-1].shape[1]

    args = [x]
    in_specs = [pl.BlockSpec((batch, in_f), lambda: (0, 0))]
    for w, b2d in zip(weights, biases2d):
        wi, wo = w.shape
        assert b2d.shape == (1, wo)
        args.append(w)
        in_specs.append(pl.BlockSpec((wi, wo), lambda: (0, 0)))
        args.append(b2d)
        in_specs.append(pl.BlockSpec((1, wo), lambda: (0, 0)))

    return pl.pallas_call(
        functools.partial(_mlp_fused_kernel, relu_flags=tuple(relu_flags)),
        out_shape=jax.ShapeDtypeStruct((batch, out_f), x.dtype),
        # Full-array blocks (block shapes equal array dims, so the (8,128)
        # divisibility rule does not apply); no grid needed at these sizes.
        in_specs=in_specs,
        out_specs=pl.BlockSpec((batch, out_f), lambda: (0, 0)),
    )(*args)


class MLP:
    """JAX/Pallas mirror of the PyTorch MLP module."""

    def __init__(self, nodes, key, s=1.0, dtype=jnp.float32):
        self.s = s
        self.nodes = nodes
        self.weights = []
        self.biases = []
        self.biases2d = []  # pre-reshaped [1, out] copies for the kernel
        keys = jax.random.split(key, len(nodes) - 1)
        for i in range(len(nodes) - 1):
            # Matches: s * randn(n_i, n_{i+1}) / n_i ** 0.5
            w = (
                self.s
                * jax.random.normal(keys[i], (nodes[i], nodes[i + 1]), dtype=dtype)
                / (nodes[i] ** 0.5)
            )
            b = jnp.zeros((nodes[i + 1],), dtype=dtype)
            self.weights.append(w)
            self.biases.append(b)
            self.biases2d.append(b.reshape(1, nodes[i + 1]))
        # ReLU on all layers except the last (identity).
        self.relu_flags = [True] * (len(self.weights) - 1) + [False]

    def forward(self, inputs):
        # One fused Pallas kernel for the entire network.
        return mlp_forward_fused(inputs, self.weights, self.biases2d, self.relu_flags)

    def forward_ref(self, inputs):
        """Pure-JAX reference for correctness checking."""
        x = inputs
        for w, b, relu in zip(self.weights, self.biases, self.relu_flags):
            x = x @ w + b
            if relu:
                x = jnp.maximum(x, 0.0)
        return x


if __name__ == "__main__":
    key = jax.random.PRNGKey(0)
    k_params, k_input = jax.random.split(key)

    nodes = [32, 64, 48, 16]  # input dim, two hidden layers, output dim
    batch = 8

    mlp = MLP(nodes, k_params)
    x = jax.random.normal(k_input, (batch, nodes[0]), dtype=jnp.float32)

    out = mlp.forward(x)
    out = jax.block_until_ready(out)

    ref = jax.block_until_ready(mlp.forward_ref(x))
    assert out.shape == (batch, nodes[-1])
    assert jnp.allclose(out, ref, atol=1e-5, rtol=1e-5)

    print("KERNEL_OK")
</pallas_src>

<mosaic_0001>
module attributes {stable_mosaic.version = 11 : i64} {
  func.func @_mlp_fused_kernel(%arg0: memref<8x32xf32, #tpu.memory_space<vmem>>, %arg1: memref<32x64xf32, #tpu.memory_space<vmem>>, %arg2: memref<1x64xf32, #tpu.memory_space<vmem>>, %arg3: memref<64x48xf32, #tpu.memory_space<vmem>>, %arg4: memref<1x48xf32, #tpu.memory_space<vmem>>, %arg5: memref<48x16xf32, #tpu.memory_space<vmem>>, %arg6: memref<1x16xf32, #tpu.memory_space<vmem>>, %arg7: memref<8x16xf32, #tpu.memory_space<vmem>>) attributes {dimension_semantics = [], scalar_prefetch = 0 : i64, scratch_operands = 0 : i64, tpu.core_type = #tpu.core_type<tc>} {
    %c0 = arith.constant 0 : index
    %c0_0 = arith.constant 0 : index
    %0 = vector.load %arg0[%c0, %c0_0] : memref<8x32xf32, #tpu.memory_space<vmem>>, vector<8x32xf32>
    %c0_1 = arith.constant 0 : index
    %c0_2 = arith.constant 0 : index
    %1 = vector.load %arg1[%c0_1, %c0_2] : memref<32x64xf32, #tpu.memory_space<vmem>>, vector<32x64xf32>
    %c0_3 = arith.constant 0 : index
    %c0_4 = arith.constant 0 : index
    %2 = vector.load %arg2[%c0_3, %c0_4] : memref<1x64xf32, #tpu.memory_space<vmem>>, vector<1x64xf32>
    %cst = arith.constant dense<0.000000e+00> : vector<8x64xf32>
    %3 = tpu.matmul %0, %1, %cst {dimension_numbers = #tpu.dot_dimension_numbers<[1], [0], [0], [1], [0, 0, 1, 1], [], []>} : vector<8x32xf32>, vector<32x64xf32>, vector<8x64xf32> -> vector<8x64xf32>
    %4 = vector.broadcast %2 : vector<1x64xf32> to vector<8x64xf32>
    %5 = arith.addf %3, %4 : vector<8x64xf32>
    %cst_5 = arith.constant 0.000000e+00 : f32
    %6 = vector.broadcast %cst_5 : f32 to vector<8x64xf32>
    %7 = arith.maximumf %5, %6 : vector<8x64xf32>
    %c0_6 = arith.constant 0 : index
    %c0_7 = arith.constant 0 : index
    %8 = vector.load %arg3[%c0_6, %c0_7] : memref<64x48xf32, #tpu.memory_space<vmem>>, vector<64x48xf32>
    %c0_8 = arith.constant 0 : index
    %c0_9 = arith.constant 0 : index
    %9 = vector.load %arg4[%c0_8, %c0_9] : memref<1x48xf32, #tpu.memory_space<vmem>>, vector<1x48xf32>
    %cst_10 = arith.constant dense<0.000000e+00> : vector<8x48xf32>
    %10 = tpu.matmul %7, %8, %cst_10 {dimension_numbers = #tpu.dot_dimension_numbers<[1], [0], [0], [1], [0, 0, 1, 1], [], []>} : vector<8x64xf32>, vector<64x48xf32>, vector<8x48xf32> -> vector<8x48xf32>
    %11 = vector.broadcast %9 : vector<1x48xf32> to vector<8x48xf32>
    %12 = arith.addf %10, %11 : vector<8x48xf32>
    %cst_11 = arith.constant 0.000000e+00 : f32
    %13 = vector.broadcast %cst_11 : f32 to vector<8x48xf32>
    %14 = arith.maximumf %12, %13 : vector<8x48xf32>
    %c0_12 = arith.constant 0 : index
    %c0_13 = arith.constant 0 : index
    %15 = vector.load %arg5[%c0_12, %c0_13] : memref<48x16xf32, #tpu.memory_space<vmem>>, vector<48x16xf32>
    %c0_14 = arith.constant 0 : index
    %c0_15 = arith.constant 0 : index
    %16 = vector.load %arg6[%c0_14, %c0_15] : memref<1x16xf32, #tpu.memory_space<vmem>>, vector<1x16xf32>
    %cst_16 = arith.constant dense<0.000000e+00> : vector<8x16xf32>
    %17 = tpu.matmul %14, %15, %cst_16 {dimension_numbers = #tpu.dot_dimension_numbers<[1], [0], [0], [1], [0, 0, 1, 1], [], []>} : vector<8x48xf32>, vector<48x16xf32>, vector<8x16xf32> -> vector<8x16xf32>
    %18 = vector.broadcast %16 : vector<1x16xf32> to vector<8x16xf32>
    %19 = arith.addf %17, %18 : vector<8x16xf32>
    %c0_17 = arith.constant 0 : index
    %c0_18 = arith.constant 0 : index
    %20 = vector.load %arg7[%c0_17, %c0_18] : memref<8x16xf32, #tpu.memory_space<vmem>>, vector<8x16xf32>
    tpu.vector_store %arg7[%c0_17, %c0_18], %19 {strides = array<i32>} : memref<8x16xf32, #tpu.memory_space<vmem>>, vector<8x16xf32>,
    return
  }
}

</mosaic_0001>

<llo_original>
// kernel: tpu_custom_call.1
$region0: #{tpu_custom_call.1}
  #allocation0 [shape = 'u32[]', space=smem, size = 0x4, offset = 0x4, fixed_abs, tag = 'smem constant byte address 0x4 - core index']
  #allocation1 [shape = 'u32[72,128]{1,0:T(1,128)}', space=vmem, size = 0x9000, scoped, tag = 'internal scratch']
  %s0 = inlined_call_operand.vmem [shape: f32[8,32], index: 0, kind: input, shape index: {}]
  %s1 = inlined_call_operand.vmem [shape: f32[32,64], index: 1, kind: input, shape index: {}]
  %s2 = inlined_call_operand.vmem [shape: f32[1,64], index: 2, kind: input, shape index: {}]
  %s3 = inlined_call_operand.vmem [shape: f32[64,48], index: 3, kind: input, shape index: {}]
  %s4 = inlined_call_operand.vmem [shape: f32[1,48], index: 4, kind: input, shape index: {}]
  %s5 = inlined_call_operand.vmem [shape: f32[48,16], index: 5, kind: input, shape index: {}]
  %s6 = inlined_call_operand.vmem [shape: f32[1,16], index: 6, kind: input, shape index: {}]
  %s7 = inlined_call_operand.hbm [shape: f32[8,16], index: 7, kind: output, shape index: {}]
  %s8 = sld [smem:[#allocation0]]
  $region38: #{tpu_custom_call.1} parent=0
    _
  %s10 = ssub.s32 1, %s8
  %s11 = scalar_select 0, %s10, %s8
  $region1: #{tpu_custom_call.1} parent=0
    #allocation2 [shape = 'u8[4096]{0}', space=vmem, size = 0x1000, scoped, tag = 'output window, operand 0, single buffered']
    #allocation3 [shape = 's32[1]{0}', space=sflag, size = 0x4, scoped, tag = 'scoped memory for tpu_custom_call.1']
    %12 = vsyncpa [#allocation3], 0
    // Predicated region
    $region2: #{tpu_custom_call.1} parent=1 // pred_check
      _
    $region3: #{tpu_custom_call.1} parent=1 // pred_check_branch
      %14 = sbr.rel (0) target = $region5
    $region4: #{tpu_custom_call.1} parent=1 // pred_region
      _
    $region5: #{tpu_custom_call.1} parent=1 // pred_fallthru
      _
    // Predicated region
    $region6: #{tpu_custom_call.1} parent=1 // pred_check
      _
    $region7: #{tpu_custom_call.1} parent=1 // pred_check_branch
      %16 = sbr.rel (0) target = $region9
    $region8: #{tpu_custom_call.1} parent=1 // pred_region
      _
    $region9: #{tpu_custom_call.1} parent=1 // pred_fallthru
      _
    // Predicated region
    $region10: #{tpu_custom_call.1} parent=1 // pred_check
      _
    $region11: #{tpu_custom_call.1} parent=1 // pred_check_branch
      %18 = sbr.rel (0) target = $region13
    $region12: #{tpu_custom_call.1} parent=1 // pred_region
      _
    $region13: #{tpu_custom_call.1} parent=1 // pred_fallthru
      _
    // Predicated region
    $region14: #{tpu_custom_call.1} parent=1 // pred_check
      _
    $region15: #{tpu_custom_call.1} parent=1 // pred_check_branch
      %20 = sbr.rel (0) target = $region17
    $region16: #{tpu_custom_call.1} parent=1 // pred_region
      _
    $region17: #{tpu_custom_call.1} parent=1 // pred_fallthru
      _
    // Predicated region
    $region18: #{tpu_custom_call.1} parent=1 // pred_check
      _
    $region19: #{tpu_custom_call.1} parent=1 // pred_check_branch
      %22 = sbr.rel (0) target = $region21
    $region20: #{tpu_custom_call.1} parent=1 // pred_region
      _
    $region21: #{tpu_custom_call.1} parent=1 // pred_fallthru
      _
    // Predicated region
    $region22: #{tpu_custom_call.1} parent=1 // pred_check
      _
    $region23: #{tpu_custom_call.1} parent=1 // pred_check_branch
      %24 = sbr.rel (0) target = $region25
    $region24: #{tpu_custom_call.1} parent=1 // pred_region
      _
    $region25: #{tpu_custom_call.1} parent=1 // pred_fallthru
      _
    // Predicated region
    $region26: #{tpu_custom_call.1} parent=1 // pred_check
      _
    $region27: #{tpu_custom_call.1} parent=1 // pred_check_branch
      %26 = sbr.rel (0) target = $region29
    $region28: #{tpu_custom_call.1} parent=1 // pred_region
      _
    $region29: #{tpu_custom_call.1} parent=1 // pred_fallthru
      _
    %v27 = vld [vmem:[%s0] sm:$0xff]
    %v28 = vld [vmem:[%s1] sm:$0xff]
    %v29 = vld [vmem:[%s1 + $0x8] sm:$0xff]
    %v30 = vld [vmem:[%s1 + $0x10] sm:$0xff]
    %v31 = vld [vmem:[%s1 + $0x18] sm:$0xff]
    %v32 = vld [vmem:[%s2] sm:$0x1]
    %v34 = vperm.slane %v32, 0
    %vm36 = vcmask 261120
    %v38 = vsel %vm36, %v27, 0
    %40 = vmatpush.msra.mxu0 0.0
    %41 = vmatpush.msra.mxu0 0.0
    %42 = vmatpush.msra.mxu0 0.0
    %43 = vmatpush.msra.mxu0 0.0
    %44 = vmatpush.msra.mxu0 0.0
    %45 = vmatpush.msra.mxu0 0.0
    %46 = vmatpush.msra.mxu0 0.0
    %47 = vmatpush.msra.mxu0 0.0
    %48 = vmatpush.msra.mxu0 0.0
    %49 = vmatpush.msra.mxu0 0.0
    %50 = vmatpush.msra.mxu0 0.0
    %51 = vmatpush.msra.mxu0 0.0
    %52 = vmatpush.msra.mxu0 %v31
    %53 = vmatpush.msra.mxu0 %v30
    %54 = vmatpush.msra.mxu0 %v29
    %55 = vmatpush.msra.mxu0 %v28
    %56 = vmatmul.f32.gmra.mxu0 %v38
    %v57 = vpop.f32.mrf.mxu0
    %v58 = vadd.f32 %v34, %v57
    %59 = vdwg.mxu0
    %v60 = vmax.f32 %v58, 0.0
    %v61 = vld [vmem:[%s3] sm:$0xff]
    %v62 = vld [vmem:[%s3 + $0x8] sm:$0xff]
    %v63 = vld [vmem:[%s3 + $0x10] sm:$0xff]
    %v64 = vld [vmem:[%s3 + $0x18] sm:$0xff]
    %v65 = vld [vmem:[%s3 + $0x20] sm:$0xff]
    %v66 = vld [vmem:[%s3 + $0x28] sm:$0xff]
    %v67 = vld [vmem:[%s3 + $0x30] sm:$0xff]
    %v68 = vld [vmem:[%s3 + $0x38] sm:$0xff]
    %v69 = vld [vmem:[%s4] sm:$0x1]
    %v71 = vperm.slane %v69, 0
    %vm73 = vcmask 523264
    %v75 = vsel %vm73, %v60, 0
    %77 = vmatpush.msra.mxu0 0.0
    %78 = vmatpush.msra.mxu0 0.0
    %79 = vmatpush.msra.mxu0 0.0
    %80 = vmatpush.msra.mxu0 0.0
    %81 = vmatpush.msra.mxu0 0.0
    %82 = vmatpush.msra.mxu0 0.0
    %83 = vmatpush.msra.mxu0 0.0
    %84 = vmatpush.msra.mxu0 0.0
    %85 = vmatpush.msra.mxu0 %v68
    %86 = vmatpush.msra.mxu0 %v67
    %87 = vmatpush.msra.mxu0 %v66
    %88 = vmatpush.msra.mxu0 %v65
    %89 = vmatpush.msra.mxu0 %v64
    %90 = vmatpush.msra.mxu0 %v63
    %91 = vmatpush.msra.mxu0 %v62
    %92 = vmatpush.msra.mxu0 %v61
    %93 = vmatmul.f32.gmra.mxu0 %v75
    %v94 = vpop.f32.mrf.mxu0
    %v95 = vadd.f32 %v71, %v94
    %96 = vdwg.mxu0
    %v97 = vmax.f32 %v95, 0.0
    %v98 = vld [vmem:[%s5] sm:$0xff]
    %v99 = vld [vmem:[%s5 + $0x8] sm:$0xff]
    %v100 = vld [vmem:[%s5 + $0x10] sm:$0xff]
    %v101 = vld [vmem:[%s5 + $0x18] sm:$0xff]
    %v102 = vld [vmem:[%s5 + $0x20] sm:$0xff]
    %v103 = vld [vmem:[%s5 + $0x28] sm:$0xff]
    %v104 = vld [vmem:[%s6] sm:$0x1]
    %v106 = vperm.slane %v104, 0
    %vm108 = vcmask 392192
    %v110 = vsel %vm108, %v97, 0
    %112 = vmatpush.msra.mxu0 0.0
    %113 = vmatpush.msra.mxu0 0.0
    %114 = vmatpush.msra.mxu0 0.0
    %115 = vmatpush.msra.mxu0 0.0
    %116 = vmatpush.msra.mxu0 0.0
    %117 = vmatpush.msra.mxu0 0.0
    %118 = vmatpush.msra.mxu0 0.0
    %119 = vmatpush.msra.mxu0 0.0
    %120 = vmatpush.msra.mxu0 0.0
    %121 = vmatpush.msra.mxu0 0.0
    %122 = vmatpush.msra.mxu0 %v103
    %123 = vmatpush.msra.mxu0 %v102
    %124 = vmatpush.msra.mxu0 %v101
    %125 = vmatpush.msra.mxu0 %v100
    %126 = vmatpush.msra.mxu0 %v99
    %127 = vmatpush.msra.mxu0 %v98
    %128 = vmatmul.f32.gmra.mxu0 %v110
    %v129 = vpop.f32.mrf.mxu0
    %v130 = vadd.f32 %v106, %v129
    %131 = vdwg.mxu0
    %vm132 = vcmask 130048
    %133 = vst.msk [vmem:[#allocation2] sm:$0xff] %vm132, %v130
    // Predicated region
    $region30: #{tpu_custom_call.1} parent=1 // pred_check
      _
    $region31: #{tpu_custom_call.1} parent=1 // pred_check_branch
      %135 = sbr.rel (0) target = $region33
    $region32: #{tpu_custom_call.1} parent=1 // pred_region
      %137 = vsyncadd [#allocation3], 0
      %s139 = sshll.u32 [#allocation2], 4
      %s140 = int_to_ptr.vmem [resolvable:$true] %s139
      %s141 = sshll.u32 %s7, 4
      %s142 = int_to_ptr.hbm [resolvable:$true] %s141
      %144 = dma.vmem_to_hbm [thread:$0]  %s140, 128, %s142, [#allocation3]
    $region33: #{tpu_custom_call.1} parent=1 // pred_fallthru
      _
    // Predicated region
    $region34: #{tpu_custom_call.1} parent=1 // pred_check
      _
    $region35: #{tpu_custom_call.1} parent=1 // pred_check_branch
      %146 = sbr.rel (0) target = $region37
    $region36: #{tpu_custom_call.1} parent=1 // pred_region
      %148 = dma.done [#allocation3], 128
    $region37: #{tpu_custom_call.1} parent=1 // pred_fallthru
      _
    %149 = vsyncpa [#allocation3], 1

</llo_original>
